<compile_context>
chip_gen: v7x
topology: tpu7x:2x2x1
jax: 0.10.0
libtpu: 0.0.40
codegen_flags: <defaults>
</compile_context>

<pallas_src>
import math

import jax
import jax.numpy as jnp
from jax.experimental import pallas as pl
from jax.experimental.pallas import tpu as pltpu


# ----------------------------------------------------------------------------
# Kernel
# ----------------------------------------------------------------------------
def _col_parallel_linear_kernel(x_ref, w_ref, b_ref, o_ref, acc_ref):
    # x_ref: (tm, tk), w_ref: (tk, tn), b_ref: (1, tn) f32,
    # o_ref: (tm, tn), acc_ref: (tm, tn) f32 scratch.
    k = pl.program_id(2)
    nk = pl.num_programs(2)

    prod = jnp.dot(x_ref[...], w_ref[...], preferred_element_type=jnp.float32)

    @pl.when(k == 0)
    def _init():
        acc_ref[...] = prod          # overwrite: no zero-fill + re-read

    @pl.when(k > 0)
    def _accumulate():
        acc_ref[...] += prod

    @pl.when(k == nk - 1)
    def _finalize():
        o_ref[...] = (acc_ref[...] + b_ref[...]).astype(o_ref.dtype)


# ----------------------------------------------------------------------------
# Generation-aware tiling
# ----------------------------------------------------------------------------
def _round_up(a, m):
    return -(-a // m) * m


def _tpu_generation():
    try:
        kind = jax.devices()[0].device_kind.lower()
    except Exception:
        return "unknown"
    if "v7" in kind:
        return "v7x"
    if "v6" in kind:
        return "v6e"
    if "v5e" in kind or "v5 lite" in kind or "v5lite" in kind:
        return "v5e"
    if "v5" in kind:
        return "v5p"
    return "unknown"


# Tile targets: AI = tm*tn/(tm+tn) vs. compute-bound thresholds
# (~714 v6e, ~311 v7x, ~240 v5e).  vmem_cap respects physical VMEM per core
# (128 MiB on v5e/v6e/v5p, 64 MiB per TC on v7x).
_TILE_TARGETS = {
    "v5e": dict(tm=512, tn=512, tk=2048, vmem_cap=100 << 20),
    "v5p": dict(tm=1024, tn=1024, tk=2048, vmem_cap=100 << 20),
    "v6e": dict(tm=1536, tn=1536, tk=2048, vmem_cap=100 << 20),
    "v7x": dict(tm=512, tn=1024, tk=1024, vmem_cap=56 << 20),
    "unknown": dict(tm=512, tn=1024, tk=1024, vmem_cap=56 << 20),
}


def _pick_tile(dim, target, align):
    """Tile for `dim`: the full extent if it fits the target, otherwise the
    largest multiple of `align` <= target whose rounded-up extent wastes at
    most ~6% (avoids the old round_up(dim, tile) blow-up on awkward shapes)."""
    dim, target = int(dim), int(target)
    if dim <= target:
        return dim
    target = max(align, (target // align) * align)
    min_ext = _round_up(dim, align)
    budget = max(align, min_ext // 16)
    for t in range(target, align - 1, -align):
        if _round_up(dim, t) - min_ext <= budget:
            return t
    return align


def _plan_k(K, target_tk):
    tk = _pick_tile(K, target_tk, 128)
    return tk, _round_up(K, tk)          # K is the only dim that is zero-padded


# ----------------------------------------------------------------------------
# One-time parameter preparation (hoisted out of the forward hot path)
# ----------------------------------------------------------------------------
def prepare_column_parallel_params(weight, bias=None, *, world_size=1, tp_rank=0,
                                   gather_output=True, mxu_dtype=jnp.bfloat16,
                                   tk=None):
    """Shard-select, transpose to (K, N) (lane-dense outputs, contraction on
    sublanes), cast to the MXU dtype and zero-pad K — once, at weight-load
    time, so the forward never re-streams the weight through HBM."""
    N_full, K = weight.shape
    assert N_full % world_size == 0, "ensure_divisibility(out_features, world_size)"
    n_local = N_full // world_size

    if gather_output:
        # Gathered output == all shards as adjacent column blocks == full weight.
        w_use, b_use, N = weight, bias, N_full
    else:
        lo, hi = tp_rank * n_local, (tp_rank + 1) * n_local
        w_use = weight[lo:hi, :]
        b_use = bias[lo:hi] if bias is not None else None
        N = n_local

    gen = _tpu_generation()
    tgt = _TILE_TARGETS.get(gen, _TILE_TARGETS["unknown"])
    compute_dtype = (jnp.dtype(mxu_dtype) if mxu_dtype is not None
                     else jnp.dtype(weight.dtype))
    tk_, Kp = _plan_k(K, tk if tk is not None else tgt["tk"])

    wt = jnp.asarray(w_use).T.astype(compute_dtype)              # (K, N)
    if Kp != K:
        wt = jnp.pad(wt, ((0, Kp - K), (0, 0)))
    b_row = (jnp.zeros((N,), jnp.float32) if b_use is None
             else jnp.asarray(b_use).astype(jnp.float32)).reshape(1, N)

    return dict(weight_kn=wt, bias_row=b_row, K=int(K), Kp=int(Kp), N=int(N),
                tk=int(tk_), compute_dtype=compute_dtype, generation=gen)


# ----------------------------------------------------------------------------
# Forward wrapper
# ----------------------------------------------------------------------------
def column_parallel_linear(x, weight=None, bias=None, *, prepared=None,
                           world_size=1, tp_rank=0, gather_output=True,
                           mxu_dtype=jnp.bfloat16,
                           tm=None, tn=None, tk=None,
                           deep_weight_buffering=True):
    """Forward of ColumnParallelLinear: Y = X @ A + b (+ all-gather)."""
    *lead, K = x.shape
    M = math.prod(lead) if lead else 1

    if prepared is None:
        prepared = prepare_column_parallel_params(
            weight, bias, world_size=world_size, tp_rank=tp_rank,
            gather_output=gather_output, mxu_dtype=mxu_dtype, tk=tk)
    assert prepared["K"] == K, "in_features mismatch"

    wt, b_row = prepared["weight_kn"], prepared["bias_row"]
    Kp, N, tk_ = prepared["Kp"], prepared["N"], prepared["tk"]
    compute_dtype = prepared["compute_dtype"]
    gen = prepared["generation"]
    tgt = _TILE_TARGETS.get(gen, _TILE_TARGETS["unknown"])
    out_dtype = jnp.dtype(x.dtype)

    tm_ = _pick_tile(M, tm if tm is not None else tgt["tm"], 8)
    tn_ = _pick_tile(N, tn if tn is not None else tgt["tn"], 128)

    # v7x has 2 TensorCores: if the M axis collapses to one block, keep >= 2
    # N blocks so dimension_semantics("parallel",...) can use both cores.
    if gen == "v7x" and pl.cdiv(M, tm_) == 1 and pl.cdiv(N, tn_) == 1 and N > 256:
        tn_ = _round_up(pl.cdiv(N, 2), 128)

    # Flatten leading dims, cast MXU operands; K is the only padded dim
    # (stale values in partial M/N edge blocks only reach dropped outputs).
    x2 = x.reshape(M, K).astype(compute_dtype)
    if Kp != K:
        x2 = jnp.pad(x2, ((0, 0), (0, Kp - K)))

    grid = (pl.cdiv(M, tm_), pl.cdiv(N, tn_), Kp // tk_)

    cbytes = compute_dtype.itemsize
    obytes = out_dtype.itemsize

    # Deeper weight prefetch only in the weight-streaming-bound regime
    # (decode-like: single M block, several weight tiles to stream).
    w_buffers = 2
    if deep_weight_buffering and grid[0] == 1 and grid[1] * grid[2] >= 4:
        w_buffers = 3
    w_spec = pl.BlockSpec((tk_, tn_), lambda i, j, k: (k, j))
    if w_buffers > 2:
        try:
            w_spec = pl.BlockSpec((tk_, tn_), lambda i, j, k: (k, j),
                                  pipeline_mode=pl.Buffered(w_buffers))
        except TypeError:       # older pallas without pipeline_mode
            w_buffers = 2

    vmem_est = (2 * tm_ * tk_ * cbytes            # x tiles (double-buffered)
                + w_buffers * tk_ * tn_ * cbytes  # weight tiles
                + 2 * tn_ * 4                     # bias tile
                + 2 * tm_ * tn_ * obytes          # output tiles
                + tm_ * tn_ * 4)                  # f32 accumulator
    vmem_limit = int(min(tgt["vmem_cap"], max(48 << 20, int(1.5 * vmem_est))))

    # Advisory cost: include x / weight re-streams under this grid order.
    cost = pl.CostEstimate(
        flops=2 * M * Kp * N,
        transcendentals=0,
        bytes_accessed=int(M * Kp * cbytes * grid[1]
                           + Kp * N * cbytes * grid[0]
                           + M * N * obytes + N * 4),
    )

    out = pl.pallas_call(
        _col_parallel_linear_kernel,
        out_shape=jax.ShapeDtypeStruct((M, N), out_dtype),
        grid_spec=pltpu.PrefetchScalarGridSpec(
            num_scalar_prefetch=0,
            grid=grid,
            in_specs=[
                pl.BlockSpec((tm_, tk_), lambda i, j, k: (i, k)),  # activations
                w_spec,                                            # (K, N) weight
                pl.BlockSpec((1, tn_), lambda i, j, k: (0, j)),    # f32 bias
            ],
            out_specs=pl.BlockSpec((tm_, tn_), lambda i, j, k: (i, j)),
            scratch_shapes=[pltpu.VMEM((tm_, tn_), jnp.float32)],
        ),
        compiler_params=pltpu.CompilerParams(
            dimension_semantics=("parallel", "parallel", "arbitrary"),
            vmem_limit_bytes=vmem_limit,
        ),
        cost_estimate=cost,
    )(x2, wt, b_row)

    return out.reshape(*lead, N)


# ----------------------------------------------------------------------------
# Self-test
# ----------------------------------------------------------------------------
if __name__ == "__main__":
    key = jax.random.PRNGKey(0)
    kx, kw, kb = jax.random.split(key, 3)

    batch, seq, in_features, out_features = 2, 8, 32, 256
    world_size = 2
    n_local = out_features // world_size

    x = jax.random.normal(kx, (batch, seq, in_features), dtype=jnp.float32)
    weight = jax.random.normal(kw, (out_features, in_features), dtype=jnp.float32) * 0.02
    bias = jax.random.normal(kb, (out_features,), dtype=jnp.float32) * 0.02

    # Reference: F.linear(x, weight, bias) followed by all-gather (== full linear).
    ref = jnp.einsum("bsk,nk->bsn", x, weight) + bias

    # 1) Default fast path: bf16 MXU operands, f32 accumulate + bias, gathered.
    y = column_parallel_linear(x, weight, bias, world_size=world_size,
                               gather_output=True)
    y = jax.block_until_ready(y)
    assert y.shape == (batch, seq, out_features)
    assert jnp.allclose(y, ref, atol=2e-2, rtol=2e-2), "bf16 mismatch vs reference"

    # 2) f32 MXU path (slow/exact path).
    y32 = column_parallel_linear(x, weight, bias, world_size=world_size,
                                 gather_output=True, mxu_dtype=jnp.float32)
    y32 = jax.block_until_ready(y32)
    assert jnp.allclose(y32, ref, atol=1e-4, rtol=1e-4), "f32 mismatch vs reference"

    # 3) Hoisted weight prep: prepare once, reuse across forwards.
    prepared = prepare_column_parallel_params(weight, bias, world_size=world_size,
                                              gather_output=True)
    y_prep = column_parallel_linear(x, prepared=prepared)
    y_prep = jax.block_until_ready(y_prep)
    assert jnp.allclose(y_prep, ref, atol=2e-2, rtol=2e-2), "prepared-path mismatch"

    # 4) gather_output=False: only this rank's shard is computed.
    y_local = column_parallel_linear(x, weight, bias, world_size=world_size,
                                     gather_output=False, tp_rank=1,
                                     mxu_dtype=jnp.float32)
    y_local = jax.block_until_ready(y_local)
    assert y_local.shape == (batch, seq, n_local)
    assert jnp.allclose(y_local, ref[..., n_local:2 * n_local],
                        atol=1e-4, rtol=1e-4), "local-shard mismatch vs reference"

    print("KERNEL_OK")
</pallas_src>

<mosaic_0001>
module attributes {stable_mosaic.version = 11 : i64} {
  func.func @_col_parallel_linear_kernel(%arg0: i32, %arg1: i32, %arg2: i32, %arg3: memref<16x32xbf16, #tpu.memory_space<vmem>>, %arg4: memref<32x256xbf16, #tpu.memory_space<vmem>>, %arg5: memref<1x256xf32, #tpu.memory_space<vmem>>, %arg6: memref<16x256xf32, #tpu.memory_space<vmem>>, %arg7: memref<16x256xf32, #tpu.memory_space<vmem>>) attributes {dimension_semantics = [#tpu.dimension_semantics<parallel>, #tpu.dimension_semantics<parallel>, #tpu.dimension_semantics<arbitrary>], iteration_bounds = array<i64: 1, 1, 1>, scalar_prefetch = 0 : i64, scratch_operands = 1 : i64, tpu.core_type = #tpu.core_type<tc>, window_params = [{transform_indices = @transform_0, window_bounds = array<i64: 16, 32>}, {transform_indices = @transform_1, window_bounds = array<i64: 32, 256>}, {transform_indices = @transform_2, window_bounds = array<i64: 1, 256>}, {transform_indices = @transform_3, window_bounds = array<i64: 16, 256>}]} {
    %c0 = arith.constant 0 : index
    %c0_0 = arith.constant 0 : index
    %0 = vector.load %arg3[%c0, %c0_0] : memref<16x32xbf16, #tpu.memory_space<vmem>>, vector<16x32xbf16>
    %c0_1 = arith.constant 0 : index
    %c0_2 = arith.constant 0 : index
    %1 = vector.load %arg4[%c0_1, %c0_2] : memref<32x256xbf16, #tpu.memory_space<vmem>>, vector<32x256xbf16>
    %cst = arith.constant dense<0.000000e+00> : vector<16x256xf32>
    %2 = tpu.matmul %0, %1, %cst {dimension_numbers = #tpu.dot_dimension_numbers<[1], [0], [0], [1], [0, 0, 1, 1], [], []>} : vector<16x32xbf16>, vector<32x256xbf16>, vector<16x256xf32> -> vector<16x256xf32>
    %c0_i32 = arith.constant 0 : i32
    %3 = arith.cmpi eq, %arg2, %c0_i32 : i32
    %4 = arith.extui %3 : i1 to i32
    %c0_i32_3 = arith.constant 0 : i32
    %5 = arith.cmpi ne, %4, %c0_i32_3 : i32
    scf.if %5 {
      %c0_8 = arith.constant 0 : index
      %c0_9 = arith.constant 0 : index
      %12 = vector.load %arg7[%c0_8, %c0_9] : memref<16x256xf32, #tpu.memory_space<vmem>>, vector<16x256xf32>
      tpu.vector_store %arg7[%c0_8, %c0_9], %2 {strides = array<i32>} : memref<16x256xf32, #tpu.memory_space<vmem>>, vector<16x256xf32>,
    } else {
    }
    %c0_i32_4 = arith.constant 0 : i32
    %6 = arith.cmpi sgt, %arg2, %c0_i32_4 : i32
    %7 = arith.extui %6 : i1 to i32
    %c0_i32_5 = arith.constant 0 : i32
    %8 = arith.cmpi ne, %7, %c0_i32_5 : i32
    scf.if %8 {
      %c0_8 = arith.constant 0 : index
      %c0_9 = arith.constant 0 : index
      %12 = vector.load %arg7[%c0_8, %c0_9] : memref<16x256xf32, #tpu.memory_space<vmem>>, vector<16x256xf32>
      %13 = arith.addf %12, %2 : vector<16x256xf32>
      %c0_10 = arith.constant 0 : index
      %c0_11 = arith.constant 0 : index
      %14 = vector.load %arg7[%c0_10, %c0_11] : memref<16x256xf32, #tpu.memory_space<vmem>>, vector<16x256xf32>
      tpu.vector_store %arg7[%c0_10, %c0_11], %13 {strides = array<i32>} : memref<16x256xf32, #tpu.memory_space<vmem>>, vector<16x256xf32>,
    } else {
    }
    %c0_i32_6 = arith.constant 0 : i32
    %9 = arith.cmpi eq, %arg2, %c0_i32_6 : i32
    %10 = arith.extui %9 : i1 to i32
    %c0_i32_7 = arith.constant 0 : i32
    %11 = arith.cmpi ne, %10, %c0_i32_7 : i32
    scf.if %11 {
      %c0_8 = arith.constant 0 : index
      %c0_9 = arith.constant 0 : index
      %12 = vector.load %arg7[%c0_8, %c0_9] : memref<16x256xf32, #tpu.memory_space<vmem>>, vector<16x256xf32>
      %c0_10 = arith.constant 0 : index
      %c0_11 = arith.constant 0 : index
      %13 = vector.load %arg5[%c0_10, %c0_11] : memref<1x256xf32, #tpu.memory_space<vmem>>, vector<1x256xf32>
      %14 = vector.broadcast %13 : vector<1x256xf32> to vector<16x256xf32>
      %15 = arith.addf %12, %14 : vector<16x256xf32>
      %c0_12 = arith.constant 0 : index
      %c0_13 = arith.constant 0 : index
      %16 = vector.load %arg6[%c0_12, %c0_13] : memref<16x256xf32, #tpu.memory_space<vmem>>, vector<16x256xf32>
      tpu.vector_store %arg6[%c0_12, %c0_13], %15 {strides = array<i32>} : memref<16x256xf32, #tpu.memory_space<vmem>>, vector<16x256xf32>,
    } else {
    }
    return
  }
  func.func @transform_0(%arg0: i32, %arg1: i32, %arg2: i32) -> (i32, i32) {
    %c0_i32 = arith.constant 0 : i32
    return %arg0, %arg2 : i32, i32
  }
  func.func @transform_1(%arg0: i32, %arg1: i32, %arg2: i32) -> (i32, i32) {
    %c0_i32 = arith.constant 0 : i32
    return %arg2, %arg1 : i32, i32
  }
  func.func @transform_2(%arg0: i32, %arg1: i32, %arg2: i32) -> (i32, i32) {
    %c0_i32 = arith.constant 0 : i32
    %c0_i32_0 = arith.constant 0 : i32
    return %c0_i32, %arg1 : i32, i32
  }
  func.func @transform_3(%arg0: i32, %arg1: i32, %arg2: i32) -> (i32, i32) {
    %c0_i32 = arith.constant 0 : i32
    return %arg0, %arg1 : i32, i32
  }
}

</mosaic_0001>

<llo_original>
// kernel: tpu_custom_call.1
$region0: #{tpu_custom_call.1}
  #allocation0 [shape = 'u32[]', space=smem, size = 0x4, offset = 0x4, fixed_abs, tag = 'smem constant byte address 0x4 - core index']
  #allocation1 [shape = 'u32[144,128]{1,0:T(1,128)}', space=vmem, size = 0x12000, scoped, tag = 'internal scratch']
  #allocation2 [shape = 'f32[16,256]{1,0:T(8,128)}', space=vmem, size = 0x4000, scoped, tag = 'scratch operand']
  %s0 = inlined_call_operand.hbm [shape: bf16[16,32], index: 0, kind: input, shape index: {}]
  %s1 = inlined_call_operand.hbm [shape: bf16[32,256], index: 1, kind: input, shape index: {}]
  %s2 = inlined_call_operand.vmem [shape: f32[1,256], index: 2, kind: input, shape index: {}]
  %s3 = inlined_call_operand.hbm [shape: f32[16,256], index: 3, kind: output, shape index: {}]
  %s4 = sld [smem:[#allocation0]]
  $region42: #{tpu_custom_call.1} parent=0
    _
  %s6 = ssub.s32 1, %s4
  %s7 = scalar_select 0, %s6, %s4
  $region1: #{tpu_custom_call.1} parent=0
    #allocation3 [shape = 'u8[4096]{0}', space=vmem, size = 0x1000, scoped, tag = 'input window, operand 0, single buffered']
    #allocation4 [shape = 's32[1]{0}', space=sflag, size = 0x4, scoped, tag = 'scoped memory for tpu_custom_call.1']
    #allocation5 [shape = 's32[1]{0}', space=sflag, size = 0x4, scoped, tag = 'scoped memory for tpu_custom_call.1']
    #allocation6 [shape = 'u8[16384]{0}', space=vmem, size = 0x4000, scoped, tag = 'input window, operand 1, single buffered']
    #allocation7 [shape = 's32[1]{0}', space=sflag, size = 0x4, scoped, tag = 'scoped memory for tpu_custom_call.1']
    #allocation8 [shape = 'u8[16384]{0}', space=vmem, size = 0x4000, scoped, tag = 'output window, operand 0, single buffered']
    %8 = vsyncpa [#allocation4], 0
    %9 = vsyncpa [#allocation7], 0
    %10 = vsyncpa [#allocation5], 0
    // Predicated region
    $region2: #{tpu_custom_call.1} parent=1 // pred_check
      _
    $region3: #{tpu_custom_call.1} parent=1 // pred_check_branch
      %12 = sbr.rel (0) target = $region5
    $region4: #{tpu_custom_call.1} parent=1 // pred_region
      %s14 = ssub.s32 128, 128
      %15 = vsyncadd [#allocation4], %s14
      %s16 = sshll.u32 [#allocation3], 4
      %s17 = int_to_ptr.vmem [resolvable:$true] %s16
      %22 = dma.hbm_to_vmem [thread:$0]  %s0, 128, %s17, [#allocation4], 64, 64, 4
    $region5: #{tpu_custom_call.1} parent=1 // pred_fallthru
      _
    // Predicated region
    $region6: #{tpu_custom_call.1} parent=1 // pred_check
      _
    $region7: #{tpu_custom_call.1} parent=1 // pred_check_branch
      %24 = sbr.rel (0) target = $region9
    $region8: #{tpu_custom_call.1} parent=1 // pred_region
      %s26 = ssub.s32 512, 512
      %27 = vsyncadd [#allocation7], %s26
      %s28 = sshll.u32 [#allocation6], 4
      %s29 = int_to_ptr.vmem [resolvable:$true] %s28
      %34 = dma.hbm_to_vmem [thread:$0]  %s1, 512, %s29, [#allocation7], 128, 128, 8
    $region9: #{tpu_custom_call.1} parent=1 // pred_fallthru
      _
    // Predicated region
    $region10: #{tpu_custom_call.1} parent=1 // pred_check
      _
    $region11: #{tpu_custom_call.1} parent=1 // pred_check_branch
      %36 = sbr.rel (0) target = $region13
    $region12: #{tpu_custom_call.1} parent=1 // pred_region
      _
    $region13: #{tpu_custom_call.1} parent=1 // pred_fallthru
      _
    // Predicated region
    $region14: #{tpu_custom_call.1} parent=1 // pred_check
      _
    $region15: #{tpu_custom_call.1} parent=1 // pred_check_branch
      %38 = sbr.rel (0) target = $region17
    $region16: #{tpu_custom_call.1} parent=1 // pred_region
      %39 = dma.done [#allocation4], 128
    $region17: #{tpu_custom_call.1} parent=1 // pred_fallthru
      _
    // Predicated region
    $region18: #{tpu_custom_call.1} parent=1 // pred_check
      _
    $region19: #{tpu_custom_call.1} parent=1 // pred_check_branch
      %41 = sbr.rel (0) target = $region21
    $region20: #{tpu_custom_call.1} parent=1 // pred_region
      %42 = dma.done [#allocation7], 512
    $region21: #{tpu_custom_call.1} parent=1 // pred_fallthru
      _
    %v44 = vld [vmem:[#allocation3] sm:$0xf]
    %v45 = vld [vmem:[#allocation3 + $0x4] sm:$0xf]
    %v46 = vld [vmem:[#allocation6] sm:$0xff]
    %v47 = vld [vmem:[#allocation6 + $0x8] sm:$0xff]
    %v48 = vld [vmem:[#allocation6 + $0x10] sm:$0xff]
    %v49 = vld [vmem:[#allocation6 + $0x18] sm:$0xff]
    %v52 = vunpack.c.l.b16 %v44
    %v53 = vunpack.c.l.b16 %v45
    %v54 = vpack.c.b16 %v53, %v52
    %v59 = vunpack.c.l.b16 %v46
    %v60 = vunpack.c.h.b16 %v46
    %v61 = vunpack.c.l.b16 %v47
    %v62 = vunpack.c.h.b16 %v47
    %v63 = vunpack.c.l.b16 %v48
    %v64 = vunpack.c.h.b16 %v48
    %v65 = vunpack.c.l.b16 %v49
    %v66 = vunpack.c.h.b16 %v49
    %v67 = vpack.c.b16 %v61, %v59
    %v68 = vpack.c.b16 %v62, %v60
    %v69 = vpack.c.b16 %v65, %v63
    %v70 = vpack.c.b16 %v66, %v64
    %vm75 = vcmask 261120
    %v77 = vsel %vm75, %v54, 0
    %79 = vmatprep.subr.bf16.mxu0 %v68
    %80 = vmatpush1.bf16.msra.mxu0 %v67
    %81 = vmatprep.subr.bf16.mxu0 %v70
    %82 = vmatpush1.bf16.msra.mxu0 %v69
    %83 = vmatprep.subr.bf16.mxu0 0
    %84 = vmatpush1.bf16.msra.mxu0 0
    %85 = vmatprep.subr.bf16.mxu0 0
    %86 = vmatpush1.bf16.msra.mxu0 0
    %87 = vmatprep.subr.bf16.mxu0 0
    %88 = vmatpush1.bf16.msra.mxu0 0
    %89 = vmatprep.subr.bf16.mxu0 0
    %90 = vmatpush1.bf16.msra.mxu0 0
    %91 = vmatprep.subr.bf16.mxu0 0
    %92 = vmatpush1.bf16.msra.mxu0 0
    %93 = vmatprep.subr.bf16.mxu0 0
    %94 = vmatpush1.bf16.msra.mxu0 0
    %95 = vmatprep.subr.bf16.mxu0 0
    %96 = vmatpush1.bf16.msra.mxu0 0
    %97 = vmatprep.subr.bf16.mxu0 0
    %98 = vmatpush1.bf16.msra.mxu0 0
    %99 = vmatprep.subr.bf16.mxu0 0
    %100 = vmatpush1.bf16.msra.mxu0 0
    %101 = vmatprep.subr.bf16.mxu0 0
    %102 = vmatpush1.bf16.msra.mxu0 0
    %103 = vmatprep.subr.bf16.mxu0 0
    %104 = vmatpush1.bf16.msra.mxu0 0
    %105 = vmatprep.subr.bf16.mxu0 0
    %106 = vmatpush1.bf16.msra.mxu0 0
    %107 = vmatprep.subr.bf16.mxu0 0
    %108 = vmatpush1.bf16.msra.mxu0 0
    %109 = vmatprep.subr.bf16.mxu0 0
    %110 = vmatpush1.bf16.msra.mxu0 0
    %111 = vmatprep.mubr.bf16.mxu0 0
    %112 = vmatmul.mubr.bf16.gmra.mrb[0].mxu0 %v77
    %v113 = vpop.f32.mrb[0].mxu0
    %v114 = vadd.f32 0.0, %v113
    %v115 = vpop.f32.mrb[0].mxu0
    %v116 = vadd.f32 0.0, %v115
    %v117 = vpop.f32.mrb[0].mxu0
    %v118 = vadd.f32 0.0, %v117
    %v119 = vpop.f32.mrb[0].mxu0
    %v120 = vadd.f32 0.0, %v119
    %121 = vdwg.mxu0
    %p122 = scmp.eq.s32.totalorder 0, 0
    // Predicated region
    $region22: #{tpu_custom_call.1} parent=1 // pred_check
      %p123 = pneg %p122
    $region23: #{tpu_custom_call.1} parent=1 // pred_check_branch
      %125 = sbr.rel (%p123) target = $region25
    $region24: #{tpu_custom_call.1} parent=1 // pred_region
      %126 = vst [vmem:[#allocation2] sm:$0xff] %v114
      %127 = vst [vmem:[#allocation2 + $0x8] sm:$0xff] %v116
      %128 = vst [vmem:[#allocation2 + $0x10] sm:$0xff] %v118
      %129 = vst [vmem:[#allocation2 + $0x18] sm:$0xff] %v120
    $region25: #{tpu_custom_call.1} parent=1 // pred_fallthru
      _
    %p130 = scmp.gt.s32.totalorder 0, 0
    // Predicated region
    $region26: #{tpu_custom_call.1} parent=1 // pred_check
      %p131 = pneg %p130
    $region27: #{tpu_custom_call.1} parent=1 // pred_check_branch
      %133 = sbr.rel (%p131) target = $region29
    $region28: #{tpu_custom_call.1} parent=1 // pred_region
      %v134 = vld [vmem:[#allocation2] sm:$0xff]
      %v135 = vld [vmem:[#allocation2 + $0x8] sm:$0xff]
      %v136 = vld [vmem:[#allocation2 + $0x10] sm:$0xff]
      %v137 = vld [vmem:[#allocation2 + $0x18] sm:$0xff]
      %v138 = vadd.f32 %v134, %v114
      %v139 = vadd.f32 %v135, %v116
      %v140 = vadd.f32 %v136, %v118
      %v141 = vadd.f32 %v137, %v120
      %142 = vst [vmem:[#allocation2] sm:$0xff] %v138
      %143 = vst [vmem:[#allocation2 + $0x8] sm:$0xff] %v139
      %144 = vst [vmem:[#allocation2 + $0x10] sm:$0xff] %v140
      %145 = vst [vmem:[#allocation2 + $0x18] sm:$0xff] %v141
    $region29: #{tpu_custom_call.1} parent=1 // pred_fallthru
      _
    // Predicated region
    $region30: #{tpu_custom_call.1} parent=1 // pred_check
      %p146 = pneg %p122
    $region31: #{tpu_custom_call.1} parent=1 // pred_check_branch
      %148 = sbr.rel (%p146) target = $region33
    $region32: #{tpu_custom_call.1} parent=1 // pred_region
      %v149 = vld [vmem:[#allocation2] sm:$0xff]
      %v150 = vld [vmem:[#allocation2 + $0x8] sm:$0xff]
      %v151 = vld [vmem:[#allocation2 + $0x10] sm:$0xff]
      %v152 = vld [vmem:[#allocation2 + $0x18] sm:$0xff]
      %v153 = vld [vmem:[%s2] sm:$0x3]
      %v155 = vlaneseq
      %v156 = vshrl.u32 %v155, 7
      %v157 = vsub.s32 0, %v156
      %v158 = vrot.slane %v153, %v157
      %v159 = vlaneseq
      %v160 = vshrl.u32 %v159, 7
      %v161 = vsub.s32 1, %v160
      %v162 = vrot.slane %v153, %v161
      %v165 = vadd.f32 %v149, %v158
      %v166 = vadd.f32 %v150, %v162
      %v167 = vadd.f32 %v151, %v158
      %v168 = vadd.f32 %v152, %v162
      %169 = vst [vmem:[#allocation8] sm:$0xff] %v165
      %170 = vst [vmem:[#allocation8 + $0x8] sm:$0xff] %v166
      %171 = vst [vmem:[#allocation8 + $0x10] sm:$0xff] %v167
      %172 = vst [vmem:[#allocation8 + $0x18] sm:$0xff] %v168
    $region33: #{tpu_custom_call.1} parent=1 // pred_fallthru
      _
    // Predicated region
    $region34: #{tpu_custom_call.1} parent=1 // pred_check
      _
    $region35: #{tpu_custom_call.1} parent=1 // pred_check_branch
      %174 = sbr.rel (0) target = $region37
    $region36: #{tpu_custom_call.1} parent=1 // pred_region
      %s176 = ssub.s32 512, 512
      %177 = vsyncadd [#allocation5], %s176
      %s178 = sshll.u32 [#allocation8], 4
      %s179 = int_to_ptr.vmem [resolvable:$true] %s178
      %184 = dma.vmem_to_hbm [thread:$0]  %s179, 512, %s3, [#allocation5], 256, 256, 16
    $region37: #{tpu_custom_call.1} parent=1 // pred_fallthru
      _
    // Predicated region
    $region38: #{tpu_custom_call.1} parent=1 // pred_check
      _
    $region39: #{tpu_custom_call.1} parent=1 // pred_check_branch
      %186 = sbr.rel (0) target = $region41
    $region40: #{tpu_custom_call.1} parent=1 // pred_region
      %187 = dma.done [#allocation5], 512
    $region41: #{tpu_custom_call.1} parent=1 // pred_fallthru
      _
    %188 = vsyncpa [#allocation4], 1
    %189 = vsyncpa [#allocation7], 1
    %190 = vsyncpa [#allocation5], 1

</llo_original>
